<compile_context>
chip_gen: v5e
topology: v5e:2x2
jax: 0.10.0
libtpu: 0.0.40
codegen_flags: <defaults>
</compile_context>

<pallas_src>
import math

import jax
import jax.numpy as jnp
import numpy as np
from jax.experimental import pallas as pl
from jax.experimental.pallas import tpu as pltpu

SEQ_LEN = 120


def make_pe(d_model: int, seq_len: int = SEQ_LEN) -> np.ndarray:
    """Mirrors the torch buffer construction exactly.

    NOTE: this deliberately reproduces the torch code's `-log(1000)/d_model // 2` operator
    precedence (the floor-divide applies to the already-divided value) and the
    `div_term[:d_model//2]` slice, so the upper half of the PE columns stays zero.
    Do not "fix" it here -- it must match the registered torch buffer bit-for-bit in intent.
    """
    pe = np.zeros((seq_len, d_model), dtype=np.float32)
    position = np.arange(0, seq_len, dtype=np.float32)[:, None]
    scale = (-math.log(1000.0) / d_model) // 2
    div_term = np.exp(np.arange(0, d_model // 2, 2, dtype=np.float32) * scale)
    pe[:, 0 : d_model // 2 : 2] = np.sin(position * div_term)
    div_term = np.exp(np.arange(1, d_model // 2, 2, dtype=np.float32) * scale)
    pe[:, 1 : d_model // 2 : 2] = np.cos(position * div_term[: d_model // 2])
    return pe[None]  # (1, SEQ_LEN, d_model)


# ----------------------------------------------------------------------------- kernel


def pos_emb_kernel(x_ref, wt_ref, peb_ref, o_ref, acc_ref):
    # x_ref  : (TM, TK)  f32   -- TM = nb*S rows of the flattened (B*S, Dp) input
    # wt_ref : (TK, TN)  bf16  -- (K, N) tile of W.T (zero-padded to Dp x Dp)
    # peb_ref: (S,  TN)  f32   -- (pe[:S] + bias) column tile, broadcast over the nb batches
    # o_ref  : (TM, TN)  f32
    # acc_ref: (TM, TN)  f32   -- VMEM accumulator, lives across the K grid axis
    k = pl.program_id(2)

    @pl.when(k == 0)
    def _init():
        acc_ref[...] = jnp.zeros_like(acc_ref)

    # in-kernel cast: VPU cast is essentially free and avoids a separate wrapper HBM pass on x
    x_bf = x_ref[...].astype(jnp.bfloat16)
    acc_ref[...] += jnp.dot(x_bf, wt_ref[...], preferred_element_type=jnp.float32)

    @pl.when(k == pl.num_programs(2) - 1)
    def _finalize():
        tm, tn = o_ref.shape
        s = peb_ref.shape[0]
        # f32 with S % 8 == 0 -> both reshapes are sublane-aligned layout no-ops
        y = acc_ref[...].reshape(tm // s, s, tn) + peb_ref[...][None]
        o_ref[...] = y.reshape(tm, tn)


# ----------------------------------------------------------------------------- tiling helpers


def _round_up(x: int, m: int) -> int:
    return ((x + m - 1) // m) * m


def _vmem_budget_bytes() -> int:
    """Generation-aware scoped-VMEM budget: ~40 MiB on v7x (64 MiB physical), ~96 MiB otherwise."""
    try:
        cap = int(getattr(pltpu.get_tpu_info(), "vmem_capacity_bytes", 128 << 20))
    except Exception:  # query unsupported / non-TPU host compile
        cap = 64 << 20
    return (40 << 20) if cap <= (64 << 20) else (96 << 20)


def _pick_batch_block(B: int, S: int, target_rows: int = 1024) -> int:
    """Largest divisor nb of B with nb*S <= target_rows (>= the v6e HBM knee of ~640 rows).

    No forced >=2 grid steps: on v5e/v6e the grid is a serial loop (splitting tiny work only adds
    per-step overhead); on v7x megacore sharding only pays when each step carries real work.
    """
    nb = 1
    for d in range(1, B + 1):
        if B % d == 0 and d * S <= target_rows:
            nb = d
    return nb


def _block_bytes(tm: int, tn: int, tk: int, s: int) -> int:
    # double-buffered pipeline blocks + single-buffered accumulator scratch
    x_b = tm * tk * 4        # f32 input rows
    w_b = tk * tn * 2        # bf16 W.T tile
    pe_b = s * tn * 4        # f32 (pe + bias) tile
    o_b = tm * tn * 4        # f32 output tile
    acc = tm * tn * 4        # f32 accumulator
    return 2 * (x_b + w_b + pe_b + o_b) + acc


def _pick_tiles(M: int, Dp: int, S: int, budget: int):
    """(tm, tn, tk): tm | M (multiple of S), tn | Dp, tk | Dp, footprint <= budget if possible."""
    tm = _pick_batch_block(M // S, S) * S
    tn = Dp if Dp <= 1024 else max(t for t in (1024, 512, 256, 128) if Dp % t == 0)
    tk = Dp
    # shrink the reduction (K) tile first -- keeps arithmetic intensity (M, N) intact
    while (_block_bytes(tm, tn, tk, S) > budget and tk > 512
           and (tk // 2) % 128 == 0 and Dp % (tk // 2) == 0):
        tk //= 2
    while (_block_bytes(tm, tn, tk, S) > budget and tn > 128
           and (tn // 2) % 128 == 0 and Dp % (tn // 2) == 0):
        tn //= 2
    while (_block_bytes(tm, tn, tk, S) > budget and tm > S
           and (tm // 2) % S == 0 and M % (tm // 2) == 0):
        tm //= 2
    return tm, tn, tk


# ----------------------------------------------------------------------------- host wrappers


def prepare_params(weight, bias, pe, seq_len: int):
    """Hoist the per-call constants (cache this across forward calls -- weights are static).

    weight: (d_model, d_model) torch Linear layout (out, in); bias: (d_model,);
    pe: (1, SEQ_LEN, d_model).  Returns W.T as bf16 and (pe[:seq_len] + bias) as f32, both
    zero-padded so d_model is a multiple of 128 (lane-dense blocks, unmasked stores).
    """
    d_model = weight.shape[0]
    dp = _round_up(max(d_model, 128), 128)
    wt = jnp.transpose(weight).astype(jnp.bfloat16)                   # (d_in, d_out) = W.T
    peb = (pe[0, :seq_len, :] + bias[None, :]).astype(jnp.float32)    # bias folded into PE slab
    if dp != d_model:
        wt = jnp.pad(wt, ((0, dp - d_model), (0, dp - d_model)))
        peb = jnp.pad(peb, ((0, 0), (0, dp - d_model)))
    return wt, peb


def position_embedding_fwd(x, wt_bf, pe_b):
    """x: (B, S, D) float; wt_bf, pe_b from prepare_params.  Returns (B, S, D) f32."""
    B, S, D = x.shape
    Dp = wt_bf.shape[1]
    if S % 8 != 0:
        raise ValueError("S must be a multiple of 8 (TPU sublane) for this kernel")
    if pe_b.shape[0] != S:
        raise ValueError("pe_b was prepared for a different sequence length")

    M = B * S
    x2 = x.reshape(M, D).astype(jnp.float32)        # contiguous reshape; kernel casts to bf16
    if Dp != D:
        x2 = jnp.pad(x2, ((0, 0), (0, Dp - D)))     # only when d_model is not a multiple of 128

    budget = _vmem_budget_bytes()
    tm, tn, tk = _pick_tiles(M, Dp, S, budget)
    need = _block_bytes(tm, tn, tk, S)
    vmem_limit = int(max(16 << 20, min(need + (4 << 20), budget)))
    if need + (1 << 20) > vmem_limit:               # never clamp below the real block footprint
        vmem_limit = int(need + (4 << 20))

    grid = (M // tm, Dp // tn, Dp // tk)

    out = pl.pallas_call(
        pos_emb_kernel,
        out_shape=jax.ShapeDtypeStruct((M, Dp), jnp.float32),
        grid_spec=pltpu.PrefetchScalarGridSpec(
            num_scalar_prefetch=0,
            grid=grid,
            in_specs=[
                pl.BlockSpec((tm, tk), lambda m, n, k: (m, k)),   # x rows, K tile
                pl.BlockSpec((tk, tn), lambda m, n, k: (k, n)),   # W.T tile
                pl.BlockSpec((S, tn), lambda m, n, k: (0, n)),    # (pe + bias) column tile
            ],
            out_specs=pl.BlockSpec((tm, tn), lambda m, n, k: (m, n)),
            scratch_shapes=[pltpu.VMEM((tm, tn), jnp.float32)],
        ),
        compiler_params=pltpu.CompilerParams(
            dimension_semantics=("parallel", "parallel", "arbitrary"),
            vmem_limit_bytes=vmem_limit,
        ),
    )(x2, wt_bf, pe_b)

    if Dp != D:
        out = out[:, :D]
    return out.reshape(B, S, D)


def position_embedding(x, weight, bias, pe):
    """Convenience wrapper matching the torch forward: x @ W.T + b + pe[:, :S]."""
    wt_bf, pe_b = prepare_params(weight, bias, pe, x.shape[1])
    return position_embedding_fwd(x, wt_bf, pe_b)


# ----------------------------------------------------------------------------- demo / check

if __name__ == "__main__":
    B, S, D = 2, 8, 32  # batch=2, seq=8, d_model=32  (S <= SEQ_LEN)

    key = jax.random.PRNGKey(0)
    kx, kw, kb = jax.random.split(key, 3)

    x = jax.random.normal(kx, (B, S, D), dtype=jnp.float32)
    # deterministic nn.Linear-style init: U(-1/sqrt(D), 1/sqrt(D)), weight is (out, in)
    bound = 1.0 / math.sqrt(D)
    weight = jax.random.uniform(kw, (D, D), dtype=jnp.float32, minval=-bound, maxval=bound)
    bias = jax.random.uniform(kb, (D,), dtype=jnp.float32, minval=-bound, maxval=bound)
    pe = jnp.asarray(make_pe(D))  # (1, SEQ_LEN, D)

    # prepare_params is the hoisted/cached piece; position_embedding_fwd is the per-call hot path
    wt_bf, pe_b = prepare_params(weight, bias, pe, S)
    out = jax.block_until_ready(position_embedding_fwd(x, wt_bf, pe_b))
    assert out.shape == (B, S, D)

    # tight check: same bf16-in / f32-accumulate math in plain JAX
    ref_bf = (
        jnp.dot(
            x.astype(jnp.bfloat16).reshape(B * S, D),
            weight.T.astype(jnp.bfloat16),
            preferred_element_type=jnp.float32,
        ).reshape(B, S, D)
        + bias[None, None, :]
        + pe[:, :S, :]
    )
    np.testing.assert_allclose(np.asarray(out), np.asarray(ref_bf), rtol=1e-4, atol=1e-4)

    # loose check: full-f32 reference (bf16 matmul inputs cost ~1e-3 relative error)
    ref_f32 = x @ weight.T + bias[None, None, :] + pe[:, :S, :]
    np.testing.assert_allclose(np.asarray(out), np.asarray(ref_f32), rtol=5e-2, atol=5e-2)

    print("KERNEL_OK")
</pallas_src>

<mosaic_0001>
module attributes {stable_mosaic.version = 11 : i64} {
  func.func @pos_emb_kernel(%arg0: i32, %arg1: i32, %arg2: i32, %arg3: memref<16x128xf32, #tpu.memory_space<vmem>>, %arg4: memref<128x128xbf16, #tpu.memory_space<vmem>>, %arg5: memref<8x128xf32, #tpu.memory_space<vmem>>, %arg6: memref<16x128xf32, #tpu.memory_space<vmem>>, %arg7: memref<16x128xf32, #tpu.memory_space<vmem>>) attributes {dimension_semantics = [#tpu.dimension_semantics<parallel>, #tpu.dimension_semantics<parallel>, #tpu.dimension_semantics<arbitrary>], iteration_bounds = array<i64: 1, 1, 1>, scalar_prefetch = 0 : i64, scratch_operands = 1 : i64, tpu.core_type = #tpu.core_type<tc>, window_params = [{transform_indices = @transform_0, window_bounds = array<i64: 16, 128>}, {transform_indices = @transform_1, window_bounds = array<i64: 128, 128>}, {transform_indices = @transform_2, window_bounds = array<i64: 8, 128>}, {transform_indices = @transform_3, window_bounds = array<i64: 16, 128>}]} {
    %c0_i32 = arith.constant 0 : i32
    %0 = arith.cmpi eq, %arg2, %c0_i32 : i32
    %1 = arith.extui %0 : i1 to i32
    %c0_i32_0 = arith.constant 0 : i32
    %2 = arith.cmpi ne, %1, %c0_i32_0 : i32
    scf.if %2 {
      %cst_10 = arith.constant 0.000000e+00 : f32
      %13 = vector.broadcast %cst_10 : f32 to vector<16x128xf32>
      %c0_11 = arith.constant 0 : index
      %c0_12 = arith.constant 0 : index
      %14 = vector.load %arg7[%c0_11, %c0_12] : memref<16x128xf32, #tpu.memory_space<vmem>>, vector<16x128xf32>
      tpu.vector_store %arg7[%c0_11, %c0_12], %13 {strides = array<i32>} : memref<16x128xf32, #tpu.memory_space<vmem>>, vector<16x128xf32>,
    } else {
    }
    %c0 = arith.constant 0 : index
    %c0_1 = arith.constant 0 : index
    %3 = vector.load %arg3[%c0, %c0_1] : memref<16x128xf32, #tpu.memory_space<vmem>>, vector<16x128xf32>
    %4 = arith.truncf %3 : vector<16x128xf32> to vector<16x128xbf16>
    %c0_2 = arith.constant 0 : index
    %c0_3 = arith.constant 0 : index
    %5 = vector.load %arg7[%c0_2, %c0_3] : memref<16x128xf32, #tpu.memory_space<vmem>>, vector<16x128xf32>
    %c0_4 = arith.constant 0 : index
    %c0_5 = arith.constant 0 : index
    %6 = vector.load %arg4[%c0_4, %c0_5] : memref<128x128xbf16, #tpu.memory_space<vmem>>, vector<128x128xbf16>
    %cst = arith.constant dense<0.000000e+00> : vector<16x128xf32>
    %7 = tpu.matmul %4, %6, %cst {dimension_numbers = #tpu.dot_dimension_numbers<[1], [0], [0], [1], [0, 0, 1, 1], [], []>} : vector<16x128xbf16>, vector<128x128xbf16>, vector<16x128xf32> -> vector<16x128xf32>
    %8 = arith.addf %5, %7 : vector<16x128xf32>
    %c0_6 = arith.constant 0 : index
    %c0_7 = arith.constant 0 : index
    %9 = vector.load %arg7[%c0_6, %c0_7] : memref<16x128xf32, #tpu.memory_space<vmem>>, vector<16x128xf32>
    tpu.vector_store %arg7[%c0_6, %c0_7], %8 {strides = array<i32>} : memref<16x128xf32, #tpu.memory_space<vmem>>, vector<16x128xf32>,
    %c0_i32_8 = arith.constant 0 : i32
    %10 = arith.cmpi eq, %arg2, %c0_i32_8 : i32
    %11 = arith.extui %10 : i1 to i32
    %c0_i32_9 = arith.constant 0 : i32
    %12 = arith.cmpi ne, %11, %c0_i32_9 : i32
    scf.if %12 {
      %c0_10 = arith.constant 0 : index
      %c0_11 = arith.constant 0 : index
      %13 = vector.load %arg7[%c0_10, %c0_11] : memref<16x128xf32, #tpu.memory_space<vmem>>, vector<16x128xf32>
      %14 = vector.shape_cast %13 : vector<16x128xf32> to vector<2x8x128xf32>
      %c0_12 = arith.constant 0 : index
      %c0_13 = arith.constant 0 : index
      %15 = vector.load %arg5[%c0_12, %c0_13] : memref<8x128xf32, #tpu.memory_space<vmem>>, vector<8x128xf32>
      %16 = vector.shape_cast %15 : vector<8x128xf32> to vector<1x8x128xf32>
      %17 = vector.broadcast %16 : vector<1x8x128xf32> to vector<2x8x128xf32>
      %18 = arith.addf %14, %17 : vector<2x8x128xf32>
      %19 = vector.shape_cast %18 : vector<2x8x128xf32> to vector<16x128xf32>
      %c0_14 = arith.constant 0 : index
      %c0_15 = arith.constant 0 : index
      %20 = vector.load %arg6[%c0_14, %c0_15] : memref<16x128xf32, #tpu.memory_space<vmem>>, vector<16x128xf32>
      tpu.vector_store %arg6[%c0_14, %c0_15], %19 {strides = array<i32>} : memref<16x128xf32, #tpu.memory_space<vmem>>, vector<16x128xf32>,
    } else {
    }
    return
  }
  func.func @transform_0(%arg0: i32, %arg1: i32, %arg2: i32) -> (i32, i32) {
    %c0_i32 = arith.constant 0 : i32
    return %arg0, %arg2 : i32, i32
  }
  func.func @transform_1(%arg0: i32, %arg1: i32, %arg2: i32) -> (i32, i32) {
    %c0_i32 = arith.constant 0 : i32
    return %arg2, %arg1 : i32, i32
  }
  func.func @transform_2(%arg0: i32, %arg1: i32, %arg2: i32) -> (i32, i32) {
    %c0_i32 = arith.constant 0 : i32
    %c0_i32_0 = arith.constant 0 : i32
    return %c0_i32, %arg1 : i32, i32
  }
  func.func @transform_3(%arg0: i32, %arg1: i32, %arg2: i32) -> (i32, i32) {
    %c0_i32 = arith.constant 0 : i32
    return %arg0, %arg1 : i32, i32
  }
}

</mosaic_0001>

<llo_original>
// kernel: tpu_custom_call.1
$region0: #{tpu_custom_call.1}
  #allocation0 [shape = 'u32[]', space=smem, size = 0x4, offset = 0x4, fixed_abs, tag = 'smem constant byte address 0x4 - core index']
  #allocation1 [shape = 'u32[72,128]{1,0:T(1,128)}', space=vmem, size = 0x9000, scoped, tag = 'internal scratch']
  #allocation2 [shape = 'f32[16,128]{1,0:T(8,128)}', space=vmem, size = 0x2000, scoped, tag = 'scratch operand']
  %s0 = inlined_call_operand.hbm [shape: f32[16,128], index: 0, kind: input, shape index: {}]
  %s1 = inlined_call_operand.hbm [shape: bf16[128,128], index: 1, kind: input, shape index: {}]
  %s2 = inlined_call_operand.hbm [shape: f32[8,128], index: 2, kind: input, shape index: {}]
  %s3 = inlined_call_operand.hbm [shape: f32[16,128], index: 3, kind: output, shape index: {}]
  %s4 = sld [smem:[#allocation0]]
  $region42: #{tpu_custom_call.1} parent=0
    _
  %s6 = ssub.s32 1, %s4
  %s7 = scalar_select 0, %s6, %s4
  $region1: #{tpu_custom_call.1} parent=0
    #allocation3 [shape = 'u8[8192]{0}', space=vmem, size = 0x2000, scoped, tag = 'input window, operand 0, single buffered']
    #allocation4 [shape = 's32[1]{0}', space=sflag, size = 0x4, scoped, tag = 'scoped memory for tpu_custom_call.1']
    #allocation5 [shape = 's32[1]{0}', space=sflag, size = 0x4, scoped, tag = 'scoped memory for tpu_custom_call.1']
    #allocation6 [shape = 'u8[32768]{0}', space=vmem, size = 0x8000, scoped, tag = 'input window, operand 1, single buffered']
    #allocation7 [shape = 's32[1]{0}', space=sflag, size = 0x4, scoped, tag = 'scoped memory for tpu_custom_call.1']
    #allocation8 [shape = 'u8[4096]{0}', space=vmem, size = 0x1000, scoped, tag = 'input window, operand 2, single buffered']
    #allocation9 [shape = 'u8[8192]{0}', space=vmem, size = 0x2000, scoped, tag = 'output window, operand 0, single buffered']
    %8 = vsyncpa [#allocation4], 0
    %9 = vsyncpa [#allocation7], 0
    %10 = vsyncpa [#allocation5], 0
    // Predicated region
    $region2: #{tpu_custom_call.1} parent=1 // pred_check
      _
    $region3: #{tpu_custom_call.1} parent=1 // pred_check_branch
      %12 = sbr.rel (0) target = $region5
    $region4: #{tpu_custom_call.1} parent=1 // pred_region
      %14 = vsyncadd [#allocation4], 0
      %s15 = sshll.u32 %s0, 4
      %s16 = int_to_ptr.hbm [resolvable:$true] %s15
      %s17 = sshll.u32 [#allocation3], 4
      %s18 = int_to_ptr.vmem [resolvable:$true] %s17
      %23 = dma.hbm_to_vmem [thread:$0]  %s16, 256, %s18, [#allocation4], 128, 128, 8
    $region5: #{tpu_custom_call.1} parent=1 // pred_fallthru
      _
    // Predicated region
    $region6: #{tpu_custom_call.1} parent=1 // pred_check
      _
    $region7: #{tpu_custom_call.1} parent=1 // pred_check_branch
      %25 = sbr.rel (0) target = $region9
    $region8: #{tpu_custom_call.1} parent=1 // pred_region
      %27 = vsyncadd [#allocation7], 0
      %s28 = sshll.u32 %s1, 4
      %s29 = int_to_ptr.hbm [resolvable:$true] %s28
      %s30 = sshll.u32 [#allocation6], 4
      %s31 = int_to_ptr.vmem [resolvable:$true] %s30
      %36 = dma.hbm_to_vmem [thread:$0]  %s29, 1024, %s31, [#allocation7], 64, 64, 4
    $region9: #{tpu_custom_call.1} parent=1 // pred_fallthru
      _
    // Predicated region
    $region10: #{tpu_custom_call.1} parent=1 // pred_check
      _
    $region11: #{tpu_custom_call.1} parent=1 // pred_check_branch
      %38 = sbr.rel (0) target = $region13
    $region12: #{tpu_custom_call.1} parent=1 // pred_region
      %40 = vsyncadd [#allocation7], 0
      %s42 = sshll.u32 %s2, 4
      %s43 = int_to_ptr.hbm [resolvable:$true] %s42
      %s44 = sshll.u32 [#allocation8], 4
      %s45 = int_to_ptr.vmem [resolvable:$true] %s44
      %47 = dma.hbm_to_vmem [thread:$0]  %s43, 128, %s45, [#allocation7]
    $region13: #{tpu_custom_call.1} parent=1 // pred_fallthru
      _
    // Predicated region
    $region14: #{tpu_custom_call.1} parent=1 // pred_check
      _
    $region15: #{tpu_custom_call.1} parent=1 // pred_check_branch
      %49 = sbr.rel (0) target = $region17
    $region16: #{tpu_custom_call.1} parent=1 // pred_region
      %51 = dma.done [#allocation4], 256
    $region17: #{tpu_custom_call.1} parent=1 // pred_fallthru
      _
    // Predicated region
    $region18: #{tpu_custom_call.1} parent=1 // pred_check
      _
    $region19: #{tpu_custom_call.1} parent=1 // pred_check_branch
      %53 = sbr.rel (0) target = $region21
    $region20: #{tpu_custom_call.1} parent=1 // pred_region
      %55 = dma.done [#allocation7], 1024
    $region21: #{tpu_custom_call.1} parent=1 // pred_fallthru
      _
    // Predicated region
    $region22: #{tpu_custom_call.1} parent=1 // pred_check
      _
    $region23: #{tpu_custom_call.1} parent=1 // pred_check_branch
      %57 = sbr.rel (0) target = $region25
    $region24: #{tpu_custom_call.1} parent=1 // pred_region
      %59 = dma.done [#allocation7], 128
    $region25: #{tpu_custom_call.1} parent=1 // pred_fallthru
      _
    %p60 = scmp.eq.s32.totalorder 0, 0
    // Predicated region
    $region26: #{tpu_custom_call.1} parent=1 // pred_check
      %p61 = pneg %p60
    $region27: #{tpu_custom_call.1} parent=1 // pred_check_branch
      %63 = sbr.rel (%p61) target = $region29
    $region28: #{tpu_custom_call.1} parent=1 // pred_region
      %64 = vst [vmem:[#allocation2] sm:$0xff] 0.0
      %65 = vst [vmem:[#allocation2 + $0x8] sm:$0xff] 0.0
    $region29: #{tpu_custom_call.1} parent=1 // pred_fallthru
      _
    %v66 = vld [vmem:[#allocation3] sm:$0xff]
    %v67 = vld [vmem:[#allocation3 + $0x8] sm:$0xff]
    %v68 = vpack.c.bf16 %v67, %v66
    %v69 = vld [vmem:[#allocation2] sm:$0xff]
    %v70 = vld [vmem:[#allocation2 + $0x8] sm:$0xff]
    %v71 = vld [vmem:[#allocation6] sm:$0xf]
    %v72 = vld [vmem:[#allocation6 + $0x4] sm:$0xf]
    %v73 = vld [vmem:[#allocation6 + $0x8] sm:$0xf]
    %v74 = vld [vmem:[#allocation6 + $0xc] sm:$0xf]
    %v75 = vld [vmem:[#allocation6 + $0x10] sm:$0xf]
    %v76 = vld [vmem:[#allocation6 + $0x14] sm:$0xf]
    %v77 = vld [vmem:[#allocation6 + $0x18] sm:$0xf]
    %v78 = vld [vmem:[#allocation6 + $0x1c] sm:$0xf]
    %v79 = vld [vmem:[#allocation6 + $0x20] sm:$0xf]
    %v80 = vld [vmem:[#allocation6 + $0x24] sm:$0xf]
    %v81 = vld [vmem:[#allocation6 + $0x28] sm:$0xf]
    %v82 = vld [vmem:[#allocation6 + $0x2c] sm:$0xf]
    %v83 = vld [vmem:[#allocation6 + $0x30] sm:$0xf]
    %v84 = vld [vmem:[#allocation6 + $0x34] sm:$0xf]
    %v85 = vld [vmem:[#allocation6 + $0x38] sm:$0xf]
    %v86 = vld [vmem:[#allocation6 + $0x3c] sm:$0xf]
    %v103 = vunpack.c.l.b16 %v71
    %v104 = vunpack.c.l.b16 %v72
    %v105 = vunpack.c.l.b16 %v73
    %v106 = vunpack.c.l.b16 %v74
    %v107 = vunpack.c.l.b16 %v75
    %v108 = vunpack.c.l.b16 %v76
    %v109 = vunpack.c.l.b16 %v77
    %v110 = vunpack.c.l.b16 %v78
    %v111 = vunpack.c.l.b16 %v79
    %v112 = vunpack.c.l.b16 %v80
    %v113 = vunpack.c.l.b16 %v81
    %v114 = vunpack.c.l.b16 %v82
    %v115 = vunpack.c.l.b16 %v83
    %v116 = vunpack.c.l.b16 %v84
    %v117 = vunpack.c.l.b16 %v85
    %v118 = vunpack.c.l.b16 %v86
    %v119 = vpack.c.b16 %v104, %v103
    %v120 = vpack.c.b16 %v106, %v105
    %v121 = vpack.c.b16 %v108, %v107
    %v122 = vpack.c.b16 %v110, %v109
    %v123 = vpack.c.b16 %v112, %v111
    %v124 = vpack.c.b16 %v114, %v113
    %v125 = vpack.c.b16 %v116, %v115
    %v126 = vpack.c.b16 %v118, %v117
    %135 = vmatpush.bf16.msra.mxu0 %v126
    %136 = vmatpush.bf16.msra.mxu0 %v125
    %137 = vmatpush.bf16.msra.mxu0 %v124
    %138 = vmatpush.bf16.msra.mxu0 %v123
    %139 = vmatpush.bf16.msra.mxu0 %v122
    %140 = vmatpush.bf16.msra.mxu0 %v121
    %141 = vmatpush.bf16.msra.mxu0 %v120
    %142 = vmatpush.bf16.msra.mxu0 %v119
    %143 = vmatmul.bf16.gmra.mxu0 %v68
    %v144 = vpop.f32.mrf.mxu0
    %v145 = vadd.f32 0.0, %v144
    %v146 = vpop.f32.mrf.mxu0
    %v147 = vadd.f32 0.0, %v146
    %148 = vdwg.mxu0
    %v149 = vadd.f32 %v69, %v145
    %v150 = vadd.f32 %v70, %v147
    %151 = vst [vmem:[#allocation2] sm:$0xff] %v149
    %152 = vst [vmem:[#allocation2 + $0x8] sm:$0xff] %v150
    // Predicated region
    $region30: #{tpu_custom_call.1} parent=1 // pred_check
      %p153 = pneg %p60
    $region31: #{tpu_custom_call.1} parent=1 // pred_check_branch
      %155 = sbr.rel (%p153) target = $region33
    $region32: #{tpu_custom_call.1} parent=1 // pred_region
      %v156 = vld [vmem:[#allocation2] sm:$0xff]
      %v157 = vld [vmem:[#allocation2 + $0x8] sm:$0xff]
      %v158 = vld [vmem:[#allocation8] sm:$0xff]
      %v159 = vadd.f32 %v156, %v158
      %v160 = vadd.f32 %v157, %v158
      %161 = vst [vmem:[#allocation9] sm:$0xff] %v159
      %162 = vst [vmem:[#allocation9 + $0x8] sm:$0xff] %v160
    $region33: #{tpu_custom_call.1} parent=1 // pred_fallthru
      _
    // Predicated region
    $region34: #{tpu_custom_call.1} parent=1 // pred_check
      _
    $region35: #{tpu_custom_call.1} parent=1 // pred_check_branch
      %164 = sbr.rel (0) target = $region37
    $region36: #{tpu_custom_call.1} parent=1 // pred_region
      %166 = vsyncadd [#allocation5], 0
      %s167 = sshll.u32 [#allocation9], 4
      %s168 = int_to_ptr.vmem [resolvable:$true] %s167
      %s169 = sshll.u32 %s3, 4
      %s170 = int_to_ptr.hbm [resolvable:$true] %s169
      %175 = dma.vmem_to_hbm [thread:$0]  %s168, 256, %s170, [#allocation5], 128, 128, 8
    $region37: #{tpu_custom_call.1} parent=1 // pred_fallthru
      _
    // Predicated region
    $region38: #{tpu_custom_call.1} parent=1 // pred_check
      _
    $region39: #{tpu_custom_call.1} parent=1 // pred_check_branch
      %177 = sbr.rel (0) target = $region41
    $region40: #{tpu_custom_call.1} parent=1 // pred_region
      %179 = dma.done [#allocation5], 256
    $region41: #{tpu_custom_call.1} parent=1 // pred_fallthru
      _
    %180 = vsyncpa [#allocation4], 1
    %181 = vsyncpa [#allocation7], 1
    %182 = vsyncpa [#allocation5], 1

</llo_original>
